<compile_context>
chip_gen: v5e
topology: v5e:2x2
jax: 0.10.0
libtpu: 0.0.40
codegen_flags: <defaults>
</compile_context>

<pallas_src>
import functools

import jax
import jax.numpy as jnp
from jax.experimental import pallas as pl
from jax.experimental.pallas import tpu as pltpu


def _round_up(x, m):
    return ((x + m - 1) // m) * m


def _pick_tk(dff_pad, target):
    """Largest multiple of 128 that divides dff_pad and is <= target (min 128)."""
    nlanes = dff_pad // 128
    best = 128
    for g in range(1, nlanes + 1):
        if nlanes % g == 0 and 128 * g <= target:
            best = 128 * g
    return best


def _vmem_caps():
    """(budget_bytes, vmem_limit_bytes) per TPU generation.

    v5e/v6e have 128 MiB VMEM -> use most of it (resident weights, big tiles).
    v7x has 64 MiB per TensorCore -> leave headroom for Mosaic internal scratch.
    """
    cap = 64 * 1024 * 1024
    try:
        info = pltpu.get_tpu_info()
        cap = int(getattr(info, "vmem_capacity_bytes", cap))
    except Exception:
        pass
    if cap >= 96 * 1024 * 1024:
        return 100 * 1024 * 1024, 112 * 1024 * 1024
    return 40 * 1024 * 1024, 50 * 1024 * 1024


def _layernorm(x_ref, a2_ref, bln_ref, *, d_true, eps, out_dtype):
    """Torch-matching LayerNorm on one (tm, d_pad) tile (unbiased std, eps on std)."""
    x = x_ref[...].astype(jnp.float32)
    # One pass: padded feature lanes of x are zero, so plain sums are the true sums.
    sum_x = jnp.sum(x, axis=-1, keepdims=True)
    sum_x2 = jnp.sum(x * x, axis=-1, keepdims=True)
    mean = sum_x * (1.0 / d_true)
    var = jnp.maximum(sum_x2 - d_true * mean * mean, 0.0) * (1.0 / max(d_true - 1, 1))
    std = jnp.sqrt(var)
    # Per-row reciprocal on the EUP (free slot) instead of dividing the whole tile.
    # The tiny floor keeps fully-padded rows finite even with eps == 0.
    rstd = pl.reciprocal(jnp.maximum(std + eps, 1e-30), approx=True)
    # a2/bln padded lanes are zero -> padded lanes of `normed` are exactly zero.
    normed = a2_ref[...] * ((x - mean) * rstd) + bln_ref[...]
    return x, normed.astype(out_dtype)


def _kernel_resident(x_ref, a2_ref, bln_ref, w1_ref, b1_ref, w2_ref, b2_ref,
                     o_ref, *, d_true, eps):
    """Grid = (row_tiles,). W1/W2 are VMEM-resident (constant index_map); no scratch."""
    x, normed = _layernorm(x_ref, a2_ref, bln_ref,
                           d_true=d_true, eps=eps, out_dtype=w1_ref.dtype)
    h = jnp.dot(normed, w1_ref[...], preferred_element_type=jnp.float32)
    h = jnp.maximum(h + b1_ref[...], 0.0)                       # bias + ReLU in f32 (VPU)
    y = jnp.dot(h.astype(w2_ref.dtype), w2_ref[...], preferred_element_type=jnp.float32)
    # dropout = eval-mode identity; residual add; direct store (no accumulator).
    o_ref[...] = (x + y + b2_ref[...]).astype(o_ref.dtype)


def _kernel_stream(x_ref, a2_ref, bln_ref, w1_ref, b1_ref, w2_ref, b2_ref,
                   o_ref, ln_sc, acc_sc, *, d_true, eps):
    """Grid = (row_tiles, d_ff_tiles). Row axis parallel, d_ff axis is a reduction."""
    k = pl.program_id(1)

    @pl.when(k == 0)
    def _init():
        _, normed = _layernorm(x_ref, a2_ref, bln_ref,
                               d_true=d_true, eps=eps, out_dtype=ln_sc.dtype)
        ln_sc[...] = normed
        acc_sc[...] = jnp.zeros_like(acc_sc)

    # ReLU is elementwise in d_ff, so per-tile ReLU + accumulate over W2 row tiles is exact.
    h = jnp.dot(ln_sc[...], w1_ref[...], preferred_element_type=jnp.float32)
    h = jnp.maximum(h + b1_ref[...], 0.0)
    acc_sc[...] += jnp.dot(h.astype(w2_ref.dtype), w2_ref[...],
                           preferred_element_type=jnp.float32)

    @pl.when(k == pl.num_programs(1) - 1)
    def _finalize():
        o_ref[...] = (x_ref[...].astype(jnp.float32) + acc_sc[...]
                      + b2_ref[...]).astype(o_ref.dtype)


def prepare_sublayer_params(a2, bln, w1, b1, w2, b2, *, compute_dtype=jnp.bfloat16):
    """One-time (load-time) padding + casting of parameters.

    a2/bln: LayerNorm scale/shift (d_model,).
    w1: (d_model, d_ff), b1: (d_ff,), w2: (d_ff, d_model), b2: (d_model,)."""
    d_model, d_ff = w1.shape
    assert w2.shape == (d_ff, d_model)
    d_pad = _round_up(d_model, 128)
    dff_pad = _round_up(d_ff, 128)
    f32 = jnp.float32
    w1p = jnp.zeros((d_pad, dff_pad), f32).at[:d_model, :d_ff].set(w1.astype(f32)).astype(compute_dtype)
    w2p = jnp.zeros((dff_pad, d_pad), f32).at[:d_ff, :d_model].set(w2.astype(f32)).astype(compute_dtype)
    b1p = jnp.zeros((1, dff_pad), f32).at[0, :d_ff].set(b1.astype(f32))
    b2p = jnp.zeros((1, d_pad), f32).at[0, :d_model].set(b2.astype(f32))
    a2p = jnp.zeros((1, d_pad), f32).at[0, :d_model].set(a2.astype(f32))
    blnp = jnp.zeros((1, d_pad), f32).at[0, :d_model].set(bln.astype(f32))
    return dict(d_model=d_model, d_ff=d_ff, d_pad=d_pad, dff_pad=dff_pad,
                compute_dtype=compute_dtype,
                a2=a2p, bln=blnp, w1=w1p, b1=b1p, w2=w2p, b2=b2p)


def sublayer_connection_ffn(x, params, *, eps=1e-16, tm=256, tk_ff=512,
                            weights_resident="auto",
                            vmem_budget_bytes=None, vmem_limit_bytes=None):
    """x: (B, S, d_model). params: output of prepare_sublayer_params."""
    B, S, d_model = x.shape
    assert d_model == params["d_model"]
    d_ff = params["d_ff"]
    d_pad = params["d_pad"]
    dff_pad = params["dff_pad"]
    compute_dtype = params["compute_dtype"]
    M = B * S
    cd = jnp.dtype(compute_dtype).itemsize
    xb = jnp.dtype(x.dtype).itemsize

    budget, gen_limit = _vmem_caps()
    if vmem_budget_bytes is not None:
        budget = int(vmem_budget_bytes)
    if vmem_limit_bytes is not None:
        gen_limit = int(vmem_limit_bytes)

    # Row tile: multiple of 16 (bf16 packs 16 rows per sublane group feeding the MXU).
    tm_eff = min(_round_up(tm, 16), _round_up(M, 16))

    def est_resident(tm_):
        io = 4 * tm_ * d_pad * xb                          # x-in + out tiles, double-buffered
        w = 2 * 2 * d_pad * dff_pad * cd                   # W1 + W2 (counted double-buffered)
        act = tm_ * dff_pad * 4 + tm_ * d_pad * (cd + 4)   # h(f32) + normed/residual temps
        b = 2 * 4 * (dff_pad + 3 * d_pad)
        return io + w + act + b

    def est_stream(tm_, tk_, nbuf):
        io = 4 * tm_ * d_pad * xb
        w = nbuf * 2 * d_pad * tk_ * cd                    # W1 + W2 d_ff tiles, nbuf-deep
        act = tm_ * tk_ * 4                                # h(f32) tile
        sc = tm_ * d_pad * (cd + 4)                        # LN scratch + f32 accumulator
        b = 2 * 4 * (tk_ + 3 * d_pad)
        return io + w + act + sc + b

    if weights_resident == "auto":
        resident = est_resident(tm_eff) <= budget
    else:
        resident = bool(weights_resident)

    tk = dff_pad
    nbuf = 3
    if resident:
        # Weights resident -> grow tm to amortize per-step overhead and x/out DMA.
        target_tm = min(512, _round_up(M, 16))
        while tm_eff * 2 <= target_tm and est_resident(tm_eff * 2) <= budget:
            tm_eff *= 2
        while est_resident(tm_eff) > budget and tm_eff > 16:
            tm_eff = max(16, ((tm_eff // 2) // 16) * 16)
        est = est_resident(tm_eff)
    else:
        # Streamed weights: arithmetic intensity ~ tm, so raise tm and shrink tk first.
        tm_eff = min(_round_up(max(tm, 512), 16), _round_up(M, 16))
        tk = _pick_tk(dff_pad, min(_round_up(tk_ff, 128), dff_pad))
        while est_stream(tm_eff, tk, nbuf) > budget:
            new_tk = _pick_tk(dff_pad, tk // 2) if tk > 128 else tk
            if new_tk < tk:
                tk = new_tk
            elif tm_eff > 256:
                tm_eff = max(256, ((tm_eff // 2) // 16) * 16)
            elif tm_eff > 16:
                tm_eff = max(16, ((tm_eff // 2) // 16) * 16)
            else:
                break
        est = est_stream(tm_eff, tk, nbuf)

    M_pad = _round_up(M, tm_eff)
    # Give the "parallel" row axis at least 2 tiles so both v7x TensorCores get work.
    if M_pad // tm_eff < 2 and M >= 256:
        tm_eff = _round_up(-(-M // 2), 16)
        M_pad = _round_up(M, tm_eff)
    n_row_tiles = M_pad // tm_eff

    # Pad activations (per-call; params were padded once at load time).
    xr = x.reshape(M, d_model)
    if M_pad != M or d_pad != d_model:
        x2 = jnp.zeros((M_pad, d_pad), x.dtype).at[:M, :d_model].set(xr)
    else:
        x2 = xr

    vmem_limit = int(min(gen_limit, max(32 * 1024 * 1024, 2 * est)))
    w_bytes = 2 * d_pad * dff_pad * cd * (1 if resident else n_row_tiles)
    cost = pl.CostEstimate(
        flops=int(4 * M * d_model * d_ff),
        transcendentals=int(2 * M),
        bytes_accessed=int(2 * M_pad * d_pad * xb + w_bytes + 4 * (dff_pad + 3 * d_pad)),
    )

    if resident:
        kernel = functools.partial(_kernel_resident, d_true=d_model, eps=float(eps))
        grid = (n_row_tiles,)
        in_specs = [
            pl.BlockSpec((tm_eff, d_pad), lambda i: (i, 0)),     # x row tile
            pl.BlockSpec((1, d_pad), lambda i: (0, 0)),          # LN scale a_2
            pl.BlockSpec((1, d_pad), lambda i: (0, 0)),          # LN shift b_2
            pl.BlockSpec((d_pad, dff_pad), lambda i: (0, 0)),    # W1 (resident, DMA'd once)
            pl.BlockSpec((1, dff_pad), lambda i: (0, 0)),        # b1
            pl.BlockSpec((dff_pad, d_pad), lambda i: (0, 0)),    # W2 (resident, DMA'd once)
            pl.BlockSpec((1, d_pad), lambda i: (0, 0)),          # b2
        ]
        out_specs = pl.BlockSpec((tm_eff, d_pad), lambda i: (i, 0))
        scratch_shapes = []
        dim_sem = ("parallel",)
    else:
        kernel = functools.partial(_kernel_stream, d_true=d_model, eps=float(eps))
        k_steps = dff_pad // tk
        grid = (n_row_tiles, k_steps)
        w_pipe = dict(pipeline_mode=pl.Buffered(3)) if k_steps >= 3 else {}
        in_specs = [
            pl.BlockSpec((tm_eff, d_pad), lambda i, k: (i, 0)),          # x row tile
            pl.BlockSpec((1, d_pad), lambda i, k: (0, 0)),               # LN scale a_2
            pl.BlockSpec((1, d_pad), lambda i, k: (0, 0)),               # LN shift b_2
            pl.BlockSpec((d_pad, tk), lambda i, k: (0, k), **w_pipe),    # W1 d_ff tile
            pl.BlockSpec((1, tk), lambda i, k: (0, k)),                  # b1 d_ff tile
            pl.BlockSpec((tk, d_pad), lambda i, k: (k, 0), **w_pipe),    # W2 d_ff tile
            pl.BlockSpec((1, d_pad), lambda i, k: (0, 0)),               # b2
        ]
        out_specs = pl.BlockSpec((tm_eff, d_pad), lambda i, k: (i, 0))
        scratch_shapes = [
            pltpu.VMEM((tm_eff, d_pad), compute_dtype),   # LayerNorm(x) tile
            pltpu.VMEM((tm_eff, d_pad), jnp.float32),     # FFN f32 accumulator
        ]
        dim_sem = ("parallel", "arbitrary")

    out2 = pl.pallas_call(
        kernel,
        out_shape=jax.ShapeDtypeStruct((M_pad, d_pad), x.dtype),
        grid_spec=pltpu.PrefetchScalarGridSpec(
            num_scalar_prefetch=0,
            grid=grid,
            in_specs=in_specs,
            out_specs=out_specs,
            scratch_shapes=scratch_shapes,
        ),
        compiler_params=pltpu.CompilerParams(
            dimension_semantics=dim_sem,
            vmem_limit_bytes=vmem_limit,
        ),
        cost_estimate=cost,
    )(x2, params["a2"], params["bln"], params["w1"], params["b1"],
      params["w2"], params["b2"])

    return out2[:M, :d_model].reshape(B, S, d_model)


if __name__ == "__main__":
    key = jax.random.PRNGKey(0)
    eps = 1e-16

    def make_case(k, B, S, d_model, d_ff):
        kx, ka, kb, kw1, kb1, kw2, kb2 = jax.random.split(k, 7)
        x = jax.random.normal(kx, (B, S, d_model), dtype=jnp.float32)
        a2 = 1.0 + 0.1 * jax.random.normal(ka, (d_model,), dtype=jnp.float32)
        bln = 0.1 * jax.random.normal(kb, (d_model,), dtype=jnp.float32)
        # Sublayer = position-wise FFN; nn.Linear weights pre-transposed to (in, out).
        w1 = (0.1 * jax.random.normal(kw1, (d_ff, d_model), dtype=jnp.float32)).T
        b1 = 0.1 * jax.random.normal(kb1, (d_ff,), dtype=jnp.float32)
        w2 = (0.1 * jax.random.normal(kw2, (d_model, d_ff), dtype=jnp.float32)).T
        b2 = 0.1 * jax.random.normal(kb2, (d_model,), dtype=jnp.float32)
        return x, a2, bln, w1, b1, w2, b2

    def reference(x, a2, bln, w1, b1, w2, b2):
        # x + dropout(sublayer(LayerNorm(x))), dropout = identity (eval).
        mean = jnp.mean(x, axis=-1, keepdims=True)
        std = jnp.std(x, axis=-1, keepdims=True, ddof=1)   # torch std is unbiased
        normed = a2 * (x - mean) / (std + eps) + bln
        return x + (jnp.maximum(normed @ w1 + b1, 0.0) @ w2 + b2)

    k1, k2 = jax.random.split(key)

    # Case 1: small shapes consistent with the module's forward (batch, sent_len, d_model)
    # -> resident-weight path (weights DMA'd once, stay in VMEM for the whole grid).
    x, a2, bln, w1, b1, w2, b2 = make_case(k1, 2, 8, 32, 64)
    params = prepare_sublayer_params(a2, bln, w1, b1, w2, b2, compute_dtype=jnp.bfloat16)
    out = sublayer_connection_ffn(x, params, eps=eps)
    jax.block_until_ready(out)
    ref = reference(x, a2, bln, w1, b1, w2, b2)
    assert out.shape == x.shape
    assert bool(jnp.all(jnp.isfinite(out)))
    # bf16 MXU operands with f32 accumulation -> loosened tolerance vs f32 reference.
    assert jnp.allclose(out, ref, atol=5e-2, rtol=5e-2)

    # Case 2: exercise the streamed-weight path (k grid axis, f32 accumulator, Buffered(3)).
    x, a2, bln, w1, b1, w2, b2 = make_case(k2, 2, 16, 64, 512)
    params = prepare_sublayer_params(a2, bln, w1, b1, w2, b2, compute_dtype=jnp.bfloat16)
    out = sublayer_connection_ffn(x, params, eps=eps, tk_ff=128, weights_resident=False)
    jax.block_until_ready(out)
    ref = reference(x, a2, bln, w1, b1, w2, b2)
    assert out.shape == x.shape
    assert bool(jnp.all(jnp.isfinite(out)))
    assert jnp.allclose(out, ref, atol=5e-2, rtol=5e-2)

    print("KERNEL_OK")
</pallas_src>

<mosaic_0001>
module attributes {stable_mosaic.version = 11 : i64} {
  func.func @_kernel_resident(%arg0: i32, %arg1: memref<16x128xf32, #tpu.memory_space<vmem>>, %arg2: memref<1x128xf32, #tpu.memory_space<vmem>>, %arg3: memref<1x128xf32, #tpu.memory_space<vmem>>, %arg4: memref<128x128xbf16, #tpu.memory_space<vmem>>, %arg5: memref<1x128xf32, #tpu.memory_space<vmem>>, %arg6: memref<128x128xbf16, #tpu.memory_space<vmem>>, %arg7: memref<1x128xf32, #tpu.memory_space<vmem>>, %arg8: memref<16x128xf32, #tpu.memory_space<vmem>>) attributes {dimension_semantics = [#tpu.dimension_semantics<parallel>], iteration_bounds = array<i64: 1>, scalar_prefetch = 0 : i64, scratch_operands = 0 : i64, tpu.core_type = #tpu.core_type<tc>, window_params = [{transform_indices = @transform_0, window_bounds = array<i64: 16, 128>}, {pipeline_mode = #tpu.pipeline_mode<synchronous>, transform_indices = @transform_1, window_bounds = array<i64: 1, 128>}, {pipeline_mode = #tpu.pipeline_mode<synchronous>, transform_indices = @transform_2, window_bounds = array<i64: 1, 128>}, {pipeline_mode = #tpu.pipeline_mode<synchronous>, transform_indices = @transform_3, window_bounds = array<i64: 128, 128>}, {pipeline_mode = #tpu.pipeline_mode<synchronous>, transform_indices = @transform_4, window_bounds = array<i64: 1, 128>}, {pipeline_mode = #tpu.pipeline_mode<synchronous>, transform_indices = @transform_5, window_bounds = array<i64: 128, 128>}, {pipeline_mode = #tpu.pipeline_mode<synchronous>, transform_indices = @transform_6, window_bounds = array<i64: 1, 128>}, {transform_indices = @transform_7, window_bounds = array<i64: 16, 128>}]} {
    %c0 = arith.constant 0 : index
    %c0_0 = arith.constant 0 : index
    %0 = vector.load %arg1[%c0, %c0_0] : memref<16x128xf32, #tpu.memory_space<vmem>>, vector<16x128xf32>
    %cst = arith.constant dense<0.000000e+00> : vector<16xf32>
    %1 = vector.multi_reduction <add>, %0, %cst [1] : vector<16x128xf32> to vector<16xf32>
    %2 = vector.shape_cast %1 : vector<16xf32> to vector<16x1xf32>
    %3 = arith.mulf %0, %0 : vector<16x128xf32>
    %cst_1 = arith.constant dense<0.000000e+00> : vector<16xf32>
    %4 = vector.multi_reduction <add>, %3, %cst_1 [1] : vector<16x128xf32> to vector<16xf32>
    %5 = vector.shape_cast %4 : vector<16xf32> to vector<16x1xf32>
    %cst_2 = arith.constant 3.125000e-02 : f32
    %6 = vector.broadcast %cst_2 : f32 to vector<16x1xf32>
    %7 = arith.mulf %2, %6 : vector<16x1xf32>
    %cst_3 = arith.constant 3.200000e+01 : f32
    %8 = vector.broadcast %cst_3 : f32 to vector<16x1xf32>
    %9 = arith.mulf %8, %7 : vector<16x1xf32>
    %10 = arith.mulf %9, %7 : vector<16x1xf32>
    %11 = arith.subf %5, %10 : vector<16x1xf32>
    %cst_4 = arith.constant 0.000000e+00 : f32
    %12 = vector.broadcast %cst_4 : f32 to vector<16x1xf32>
    %13 = arith.maximumf %11, %12 : vector<16x1xf32>
    %cst_5 = arith.constant 0.0322580636 : f32
    %14 = vector.broadcast %cst_5 : f32 to vector<16x1xf32>
    %15 = arith.mulf %13, %14 : vector<16x1xf32>
    %16 = math.sqrt %15 : vector<16x1xf32>
    %cst_6 = arith.constant 1.000000e-16 : f32
    %17 = vector.broadcast %cst_6 : f32 to vector<16x1xf32>
    %18 = arith.addf %16, %17 : vector<16x1xf32>
    %cst_7 = arith.constant 1.000000e-30 : f32
    %19 = vector.broadcast %cst_7 : f32 to vector<16x1xf32>
    %20 = arith.maximumf %18, %19 : vector<16x1xf32>
    %21 = tpu.reciprocal %20 {approx = true} : vector<16x1xf32> -> vector<16x1xf32>
    %c0_8 = arith.constant 0 : index
    %c0_9 = arith.constant 0 : index
    %22 = vector.load %arg2[%c0_8, %c0_9] : memref<1x128xf32, #tpu.memory_space<vmem>>, vector<1x128xf32>
    %23 = vector.broadcast %7 : vector<16x1xf32> to vector<16x128xf32>
    %24 = arith.subf %0, %23 : vector<16x128xf32>
    %25 = vector.broadcast %21 : vector<16x1xf32> to vector<16x128xf32>
    %26 = arith.mulf %24, %25 : vector<16x128xf32>
    %27 = vector.broadcast %22 : vector<1x128xf32> to vector<16x128xf32>
    %28 = arith.mulf %27, %26 : vector<16x128xf32>
    %c0_10 = arith.constant 0 : index
    %c0_11 = arith.constant 0 : index
    %29 = vector.load %arg3[%c0_10, %c0_11] : memref<1x128xf32, #tpu.memory_space<vmem>>, vector<1x128xf32>
    %30 = vector.broadcast %29 : vector<1x128xf32> to vector<16x128xf32>
    %31 = arith.addf %28, %30 : vector<16x128xf32>
    %32 = arith.truncf %31 : vector<16x128xf32> to vector<16x128xbf16>
    %c0_12 = arith.constant 0 : index
    %c0_13 = arith.constant 0 : index
    %33 = vector.load %arg4[%c0_12, %c0_13] : memref<128x128xbf16, #tpu.memory_space<vmem>>, vector<128x128xbf16>
    %cst_14 = arith.constant dense<0.000000e+00> : vector<16x128xf32>
    %34 = tpu.matmul %32, %33, %cst_14 {dimension_numbers = #tpu.dot_dimension_numbers<[1], [0], [0], [1], [0, 0, 1, 1], [], []>} : vector<16x128xbf16>, vector<128x128xbf16>, vector<16x128xf32> -> vector<16x128xf32>
    %c0_15 = arith.constant 0 : index
    %c0_16 = arith.constant 0 : index
    %35 = vector.load %arg5[%c0_15, %c0_16] : memref<1x128xf32, #tpu.memory_space<vmem>>, vector<1x128xf32>
    %36 = vector.broadcast %35 : vector<1x128xf32> to vector<16x128xf32>
    %37 = arith.addf %34, %36 : vector<16x128xf32>
    %cst_17 = arith.constant 0.000000e+00 : f32
    %38 = vector.broadcast %cst_17 : f32 to vector<16x128xf32>
    %39 = arith.maximumf %37, %38 : vector<16x128xf32>
    %40 = arith.truncf %39 : vector<16x128xf32> to vector<16x128xbf16>
    %c0_18 = arith.constant 0 : index
    %c0_19 = arith.constant 0 : index
    %41 = vector.load %arg6[%c0_18, %c0_19] : memref<128x128xbf16, #tpu.memory_space<vmem>>, vector<128x128xbf16>
    %cst_20 = arith.constant dense<0.000000e+00> : vector<16x128xf32>
    %42 = tpu.matmul %40, %41, %cst_20 {dimension_numbers = #tpu.dot_dimension_numbers<[1], [0], [0], [1], [0, 0, 1, 1], [], []>} : vector<16x128xbf16>, vector<128x128xbf16>, vector<16x128xf32> -> vector<16x128xf32>
    %43 = arith.addf %0, %42 : vector<16x128xf32>
    %c0_21 = arith.constant 0 : index
    %c0_22 = arith.constant 0 : index
    %44 = vector.load %arg7[%c0_21, %c0_22] : memref<1x128xf32, #tpu.memory_space<vmem>>, vector<1x128xf32>
    %45 = vector.broadcast %44 : vector<1x128xf32> to vector<16x128xf32>
    %46 = arith.addf %43, %45 : vector<16x128xf32>
    %c0_23 = arith.constant 0 : index
    %c0_24 = arith.constant 0 : index
    %47 = vector.load %arg8[%c0_23, %c0_24] : memref<16x128xf32, #tpu.memory_space<vmem>>, vector<16x128xf32>
    tpu.vector_store %arg8[%c0_23, %c0_24], %46 {strides = array<i32>} : memref<16x128xf32, #tpu.memory_space<vmem>>, vector<16x128xf32>,
    return
  }
  func.func @transform_0(%arg0: i32) -> (i32, i32) {
    %c0_i32 = arith.constant 0 : i32
    %c0_i32_0 = arith.constant 0 : i32
    return %arg0, %c0_i32 : i32, i32
  }
  func.func @transform_1(%arg0: i32) -> (i32, i32) {
    %c0_i32 = arith.constant 0 : i32
    %c0_i32_0 = arith.constant 0 : i32
    %c0_i32_1 = arith.constant 0 : i32
    return %c0_i32, %c0_i32_0 : i32, i32
  }
  func.func @transform_2(%arg0: i32) -> (i32, i32) {
    %c0_i32 = arith.constant 0 : i32
    %c0_i32_0 = arith.constant 0 : i32
    %c0_i32_1 = arith.constant 0 : i32
    return %c0_i32, %c0_i32_0 : i32, i32
  }
  func.func @transform_3(%arg0: i32) -> (i32, i32) {
    %c0_i32 = arith.constant 0 : i32
    %c0_i32_0 = arith.constant 0 : i32
    %c0_i32_1 = arith.constant 0 : i32
    return %c0_i32, %c0_i32_0 : i32, i32
  }
  func.func @transform_4(%arg0: i32) -> (i32, i32) {
    %c0_i32 = arith.constant 0 : i32
    %c0_i32_0 = arith.constant 0 : i32
    %c0_i32_1 = arith.constant 0 : i32
    return %c0_i32, %c0_i32_0 : i32, i32
  }
  func.func @transform_5(%arg0: i32) -> (i32, i32) {
    %c0_i32 = arith.constant 0 : i32
    %c0_i32_0 = arith.constant 0 : i32
    %c0_i32_1 = arith.constant 0 : i32
    return %c0_i32, %c0_i32_0 : i32, i32
  }
  func.func @transform_6(%arg0: i32) -> (i32, i32) {
    %c0_i32 = arith.constant 0 : i32
    %c0_i32_0 = arith.constant 0 : i32
    %c0_i32_1 = arith.constant 0 : i32
    return %c0_i32, %c0_i32_0 : i32, i32
  }
  func.func @transform_7(%arg0: i32) -> (i32, i32) {
    %c0_i32 = arith.constant 0 : i32
    %c0_i32_0 = arith.constant 0 : i32
    return %arg0, %c0_i32 : i32, i32
  }
}

</mosaic_0001>

<llo_original>
// kernel: tpu_custom_call.1
$region0: #{tpu_custom_call.1}
  #allocation0 [shape = 'u32[]', space=smem, size = 0x4, offset = 0x4, fixed_abs, tag = 'smem constant byte address 0x4 - core index']
  #allocation1 [shape = 'u32[72,128]{1,0:T(1,128)}', space=vmem, size = 0x9000, scoped, tag = 'internal scratch']
  %s0 = inlined_call_operand.hbm [shape: f32[16,128], index: 0, kind: input, shape index: {}]
  %s1 = inlined_call_operand.hbm [shape: f32[1,128], index: 1, kind: input, shape index: {}]
  %s2 = inlined_call_operand.vmem [shape: f32[1,128], index: 2, kind: input, shape index: {}]
  %s3 = inlined_call_operand.hbm [shape: bf16[128,128], index: 3, kind: input, shape index: {}]
  %s4 = inlined_call_operand.vmem [shape: f32[1,128], index: 4, kind: input, shape index: {}]
  %s5 = inlined_call_operand.hbm [shape: bf16[128,128], index: 5, kind: input, shape index: {}]
  %s6 = inlined_call_operand.vmem [shape: f32[1,128], index: 6, kind: input, shape index: {}]
  %s7 = inlined_call_operand.hbm [shape: f32[16,128], index: 7, kind: output, shape index: {}]
  %s8 = sld [smem:[#allocation0]]
  $region54: #{tpu_custom_call.1} parent=0
    _
  %s10 = ssub.s32 1, %s8
  %s11 = scalar_select 0, %s10, %s8
  $region1: #{tpu_custom_call.1} parent=0
    #allocation2 [shape = 'u8[8192]{0}', space=vmem, size = 0x2000, scoped, tag = 'input window, operand 0, single buffered']
    #allocation3 [shape = 's32[1]{0}', space=sflag, size = 0x4, scoped, tag = 'scoped memory for tpu_custom_call.1']
    #allocation4 [shape = 's32[1]{0}', space=sflag, size = 0x4, scoped, tag = 'scoped memory for tpu_custom_call.1']
    #allocation5 [shape = 'u8[512]{0}', space=vmem, size = 0x400, scoped, tag = 'input window, operand 1, single buffered']
    #allocation6 [shape = 's32[1]{0}', space=sflag, size = 0x4, scoped, tag = 'scoped memory for tpu_custom_call.1']
    #allocation7 [shape = 'u8[32768]{0}', space=vmem, size = 0x8000, scoped, tag = 'input window, operand 3, single buffered']
    #allocation8 [shape = 'u8[32768]{0}', space=vmem, size = 0x8000, scoped, tag = 'input window, operand 5, single buffered']
    #allocation9 [shape = 's32[1]{0}', space=sflag, size = 0x4, scoped, tag = 'scoped memory for tpu_custom_call.1']
    #allocation10 [shape = 'u8[8192]{0}', space=vmem, size = 0x2000, scoped, tag = 'output window, operand 0, single buffered']
    %12 = vsyncpa [#allocation3], 0
    %13 = vsyncpa [#allocation6], 0
    %14 = vsyncpa [#allocation9], 0
    %15 = vsyncpa [#allocation4], 0
    // Predicated region
    $region2: #{tpu_custom_call.1} parent=1 // pred_check
      _
    $region3: #{tpu_custom_call.1} parent=1 // pred_check_branch
      %17 = sbr.rel (0) target = $region5
    $region4: #{tpu_custom_call.1} parent=1 // pred_region
      %19 = vsyncadd [#allocation3], 0
      %s20 = sshll.u32 %s0, 4
      %s21 = int_to_ptr.hbm [resolvable:$true] %s20
      %s22 = sshll.u32 [#allocation2], 4
      %s23 = int_to_ptr.vmem [resolvable:$true] %s22
      %28 = dma.hbm_to_vmem [thread:$0]  %s21, 256, %s23, [#allocation3], 128, 128, 8
    $region5: #{tpu_custom_call.1} parent=1 // pred_fallthru
      _
    // Predicated region
    $region6: #{tpu_custom_call.1} parent=1 // pred_check
      _
    $region7: #{tpu_custom_call.1} parent=1 // pred_check_branch
      %30 = sbr.rel (0) target = $region9
    $region8: #{tpu_custom_call.1} parent=1 // pred_region
      %32 = vsyncadd [#allocation6], 0
      %s34 = sshll.u32 %s1, 4
      %s35 = int_to_ptr.hbm [resolvable:$true] %s34
      %s36 = sshll.u32 [#allocation5], 4
      %s37 = int_to_ptr.vmem [resolvable:$true] %s36
      %39 = dma.hbm_to_vmem [thread:$0]  %s35, 16, %s37, [#allocation6]
    $region9: #{tpu_custom_call.1} parent=1 // pred_fallthru
      _
    // Predicated region
    $region10: #{tpu_custom_call.1} parent=1 // pred_check
      _
    $region11: #{tpu_custom_call.1} parent=1 // pred_check_branch
      %41 = sbr.rel (0) target = $region13
    $region12: #{tpu_custom_call.1} parent=1 // pred_region
      _
    $region13: #{tpu_custom_call.1} parent=1 // pred_fallthru
      _
    // Predicated region
    $region14: #{tpu_custom_call.1} parent=1 // pred_check
      _
    $region15: #{tpu_custom_call.1} parent=1 // pred_check_branch
      %43 = sbr.rel (0) target = $region17
    $region16: #{tpu_custom_call.1} parent=1 // pred_region
      %45 = vsyncadd [#allocation6], 0
      %s46 = sshll.u32 %s3, 4
      %s47 = int_to_ptr.hbm [resolvable:$true] %s46
      %s48 = sshll.u32 [#allocation7], 4
      %s49 = int_to_ptr.vmem [resolvable:$true] %s48
      %54 = dma.hbm_to_vmem [thread:$0]  %s47, 1024, %s49, [#allocation6], 64, 64, 4
    $region17: #{tpu_custom_call.1} parent=1 // pred_fallthru
      _
    // Predicated region
    $region18: #{tpu_custom_call.1} parent=1 // pred_check
      _
    $region19: #{tpu_custom_call.1} parent=1 // pred_check_branch
      %56 = sbr.rel (0) target = $region21
    $region20: #{tpu_custom_call.1} parent=1 // pred_region
      _
    $region21: #{tpu_custom_call.1} parent=1 // pred_fallthru
      _
    // Predicated region
    $region22: #{tpu_custom_call.1} parent=1 // pred_check
      _
    $region23: #{tpu_custom_call.1} parent=1 // pred_check_branch
      %58 = sbr.rel (0) target = $region25
    $region24: #{tpu_custom_call.1} parent=1 // pred_region
      %60 = vsyncadd [#allocation9], 0
      %s61 = sshll.u32 %s5, 4
      %s62 = int_to_ptr.hbm [resolvable:$true] %s61
      %s63 = sshll.u32 [#allocation8], 4
      %s64 = int_to_ptr.vmem [resolvable:$true] %s63
      %69 = dma.hbm_to_vmem [thread:$0]  %s62, 1024, %s64, [#allocation9], 64, 64, 4
    $region25: #{tpu_custom_call.1} parent=1 // pred_fallthru
      _
    // Predicated region
    $region26: #{tpu_custom_call.1} parent=1 // pred_check
      _
    $region27: #{tpu_custom_call.1} parent=1 // pred_check_branch
      %71 = sbr.rel (0) target = $region29
    $region28: #{tpu_custom_call.1} parent=1 // pred_region
      _
    $region29: #{tpu_custom_call.1} parent=1 // pred_fallthru
      _
    // Predicated region
    $region30: #{tpu_custom_call.1} parent=1 // pred_check
      _
    $region31: #{tpu_custom_call.1} parent=1 // pred_check_branch
      %73 = sbr.rel (0) target = $region33
    $region32: #{tpu_custom_call.1} parent=1 // pred_region
      %75 = dma.done [#allocation3], 256
    $region33: #{tpu_custom_call.1} parent=1 // pred_fallthru
      _
    // Predicated region
    $region34: #{tpu_custom_call.1} parent=1 // pred_check
      _
    $region35: #{tpu_custom_call.1} parent=1 // pred_check_branch
      %77 = sbr.rel (0) target = $region37
    $region36: #{tpu_custom_call.1} parent=1 // pred_region
      %79 = dma.done [#allocation6], 16
    $region37: #{tpu_custom_call.1} parent=1 // pred_fallthru
      _
    // Predicated region
    $region38: #{tpu_custom_call.1} parent=1 // pred_check
      _
    $region39: #{tpu_custom_call.1} parent=1 // pred_check_branch
      %81 = sbr.rel (0) target = $region41
    $region40: #{tpu_custom_call.1} parent=1 // pred_region
      %83 = dma.done [#allocation6], 1024
    $region41: #{tpu_custom_call.1} parent=1 // pred_fallthru
      _
    // Predicated region
    $region42: #{tpu_custom_call.1} parent=1 // pred_check
      _
    $region43: #{tpu_custom_call.1} parent=1 // pred_check_branch
      %85 = sbr.rel (0) target = $region45
    $region44: #{tpu_custom_call.1} parent=1 // pred_region
      %87 = dma.done [#allocation9], 1024
    $region45: #{tpu_custom_call.1} parent=1 // pred_fallthru
      _
    %v88 = vld [vmem:[#allocation2] sm:$0xff]
    %v89 = vld [vmem:[#allocation2 + $0x8] sm:$0xff]
    %90 = vadd.xlane.f32.xlu0 %v88
    %v91 = vpop.xlane.xlu0 %90
    %92 = vadd.xlane.f32.xlu0 %v89
    %v93 = vpop.xlane.xlu0 %92
    %v94 = vmul.f32 %v88, %v88
    %v95 = vmul.f32 %v89, %v89
    %96 = vadd.xlane.f32.xlu0 %v94
    %v97 = vpop.xlane.xlu0 %96
    %98 = vadd.xlane.f32.xlu0 %v95
    %v99 = vpop.xlane.xlu0 %98
    %v100 = vmul.f32 %v91, 0.03125
    %v101 = vmul.f32 %v93, 0.03125
    %v102 = vmul.f32 %v100, 32.0
    %v103 = vmul.f32 %v101, 32.0
    %v104 = vmul.f32 %v102, %v100
    %v105 = vmul.f32 %v103, %v101
    %v106 = vsub.f32 %v97, %v104
    %v107 = vsub.f32 %v99, %v105
    %v108 = vmax.f32 %v106, 0.0
    %v109 = vmax.f32 %v107, 0.0
    %v110 = vmul.f32 %v108, 0.032258064
    %v111 = vmul.f32 %v109, 0.032258064
    %v112 = vrsqrt.pop %v110
    %v113 = vmul.f32 %v112, %v110
    %v114 = vmul.f32 %v113, %v112
    %v115 = vmul.f32 0.5, %v114
    %v116 = vsub.f32 1.5, %v115
    %v117 = vmul.f32 %v112, %v116
    %v118 = vmul.f32 %v110, %v117
    %vm119 = vcmp.eq.f32.partialorder %v110, inf
    %v120 = vsel %vm119, %v110, %v118
    %vm121 = vcmp.eq.f32.partialorder %v110, 0.0
    %v122 = vand.u32 %v110, 2147483648
    %v123 = vsel %vm121, %v122, %v120
    %v124 = vrsqrt.pop %v111
    %v125 = vmul.f32 %v124, %v111
    %v126 = vmul.f32 %v125, %v124
    %v127 = vmul.f32 0.5, %v126
    %v128 = vsub.f32 1.5, %v127
    %v129 = vmul.f32 %v124, %v128
    %v130 = vmul.f32 %v111, %v129
    %vm131 = vcmp.eq.f32.partialorder %v111, inf
    %v132 = vsel %vm131, %v111, %v130
    %vm133 = vcmp.eq.f32.partialorder %v111, 0.0
    %v134 = vand.u32 %v111, 2147483648
    %v135 = vsel %vm133, %v134, %v132
    %v136 = vadd.f32 %v123, 1e-16
    %v137 = vadd.f32 %v135, 1e-16
    %v138 = vmax.f32 %v136, 1e-30
    %v139 = vmax.f32 %v137, 1e-30
    %v140 = vrcp.pop %v138
    %v141 = vrcp.pop %v139
    %v142 = vld [vmem:[#allocation5] sm:$0x1]
    %v143 = vsub.f32 %v88, %v100
    %v144 = vsub.f32 %v89, %v101
    %v145 = vmul.f32 %v143, %v140
    %v146 = vmul.f32 %v144, %v141
    %v148 = vperm.slane %v142, 0
    %v150 = vmul.f32 %v148, %v145
    %v151 = vmul.f32 %v148, %v146
    %v152 = vld [vmem:[%s2] sm:$0x1]
    %v154 = vperm.slane %v152, 0
    %v156 = vadd.f32 %v150, %v154
    %v157 = vadd.f32 %v151, %v154
    %v158 = vpack.c.bf16 %v157, %v156
    %v159 = vld [vmem:[#allocation7] sm:$0xf]
    %v160 = vld [vmem:[#allocation7 + $0x4] sm:$0xf]
    %v161 = vld [vmem:[#allocation7 + $0x8] sm:$0xf]
    %v162 = vld [vmem:[#allocation7 + $0xc] sm:$0xf]
    %v163 = vld [vmem:[#allocation7 + $0x10] sm:$0xf]
    %v164 = vld [vmem:[#allocation7 + $0x14] sm:$0xf]
    %v165 = vld [vmem:[#allocation7 + $0x18] sm:$0xf]
    %v166 = vld [vmem:[#allocation7 + $0x1c] sm:$0xf]
    %v167 = vld [vmem:[#allocation7 + $0x20] sm:$0xf]
    %v168 = vld [vmem:[#allocation7 + $0x24] sm:$0xf]
    %v169 = vld [vmem:[#allocation7 + $0x28] sm:$0xf]
    %v170 = vld [vmem:[#allocation7 + $0x2c] sm:$0xf]
    %v171 = vld [vmem:[#allocation7 + $0x30] sm:$0xf]
    %v172 = vld [vmem:[#allocation7 + $0x34] sm:$0xf]
    %v173 = vld [vmem:[#allocation7 + $0x38] sm:$0xf]
    %v174 = vld [vmem:[#allocation7 + $0x3c] sm:$0xf]
    %v175 = vld [vmem:[%s4] sm:$0x1]
    %v177 = vperm.slane %v175, 0
    %v195 = vunpack.c.l.b16 %v159
    %v196 = vunpack.c.l.b16 %v160
    %v197 = vunpack.c.l.b16 %v161
    %v198 = vunpack.c.l.b16 %v162
    %v199 = vunpack.c.l.b16 %v163
    %v200 = vunpack.c.l.b16 %v164
    %v201 = vunpack.c.l.b16 %v165
    %v202 = vunpack.c.l.b16 %v166
    %v203 = vunpack.c.l.b16 %v167
    %v204 = vunpack.c.l.b16 %v168
    %v205 = vunpack.c.l.b16 %v169
    %v206 = vunpack.c.l.b16 %v170
    %v207 = vunpack.c.l.b16 %v171
    %v208 = vunpack.c.l.b16 %v172
    %v209 = vunpack.c.l.b16 %v173
    %v210 = vunpack.c.l.b16 %v174
    %v211 = vpack.c.b16 %v196, %v195
    %v212 = vpack.c.b16 %v198, %v197
    %v213 = vpack.c.b16 %v200, %v199
    %v214 = vpack.c.b16 %v202, %v201
    %v215 = vpack.c.b16 %v204, %v203
    %v216 = vpack.c.b16 %v206, %v205
    %v217 = vpack.c.b16 %v208, %v207
    %v218 = vpack.c.b16 %v210, %v209
    %227 = vmatpush.bf16.msra.mxu0 %v218
    %228 = vmatpush.bf16.msra.mxu0 %v217
    %229 = vmatpush.bf16.msra.mxu0 %v216
    %230 = vmatpush.bf16.msra.mxu0 %v215
    %231 = vmatpush.bf16.msra.mxu0 %v214
    %232 = vmatpush.bf16.msra.mxu0 %v213
    %233 = vmatpush.bf16.msra.mxu0 %v212
    %234 = vmatpush.bf16.msra.mxu0 %v211
    %235 = vmatmul.bf16.gmra.mxu0 %v158
    %v236 = vpop.f32.mrf.mxu0
    %v237 = vadd.f32 %v177, %v236
    %v238 = vpop.f32.mrf.mxu0
    %v239 = vadd.f32 %v177, %v238
    %240 = vdwg.mxu0
    %v241 = vmax.f32 %v237, 0.0
    %v242 = vmax.f32 %v239, 0.0
    %v243 = vpack.c.bf16 %v242, %v241
    %v244 = vld [vmem:[#allocation8] sm:$0xf]
    %v245 = vld [vmem:[#allocation8 + $0x4] sm:$0xf]
    %v246 = vld [vmem:[#allocation8 + $0x8] sm:$0xf]
    %v247 = vld [vmem:[#allocation8 + $0xc] sm:$0xf]
    %v248 = vld [vmem:[#allocation8 + $0x10] sm:$0xf]
    %v249 = vld [vmem:[#allocation8 + $0x14] sm:$0xf]
    %v250 = vld [vmem:[#allocation8 + $0x18] sm:$0xf]
    %v251 = vld [vmem:[#allocation8 + $0x1c] sm:$0xf]
    %v252 = vld [vmem:[#allocation8 + $0x20] sm:$0xf]
    %v253 = vld [vmem:[#allocation8 + $0x24] sm:$0xf]
    %v254 = vld [vmem:[#allocation8 + $0x28] sm:$0xf]
    %v255 = vld [vmem:[#allocation8 + $0x2c] sm:$0xf]
    %v256 = vld [vmem:[#allocation8 + $0x30] sm:$0xf]
    %v257 = vld [vmem:[#allocation8 + $0x34] sm:$0xf]
    %v258 = vld [vmem:[#allocation8 + $0x38] sm:$0xf]
    %v259 = vld [vmem:[#allocation8 + $0x3c] sm:$0xf]
    %v276 = vunpack.c.l.b16 %v244
    %v277 = vunpack.c.l.b16 %v245
    %v278 = vunpack.c.l.b16 %v246
    %v279 = vunpack.c.l.b16 %v247
    %v280 = vunpack.c.l.b16 %v248
    %v281 = vunpack.c.l.b16 %v249
    %v282 = vunpack.c.l.b16 %v250
    %v283 = vunpack.c.l.b16 %v251
    %v284 = vunpack.c.l.b16 %v252
    %v285 = vunpack.c.l.b16 %v253
    %v286 = vunpack.c.l.b16 %v254
    %v287 = vunpack.c.l.b16 %v255
    %v288 = vunpack.c.l.b16 %v256
    %v289 = vunpack.c.l.b16 %v257
    %v290 = vunpack.c.l.b16 %v258
    %v291 = vunpack.c.l.b16 %v259
    %v292 = vpack.c.b16 %v277, %v276
    %v293 = vpack.c.b16 %v279, %v278
    %v294 = vpack.c.b16 %v281, %v280
    %v295 = vpack.c.b16 %v283, %v282
    %v296 = vpack.c.b16 %v285, %v284
    %v297 = vpack.c.b16 %v287, %v286
    %v298 = vpack.c.b16 %v289, %v288
    %v299 = vpack.c.b16 %v291, %v290
    %308 = vmatpush.bf16.msra.mxu0 %v299
    %309 = vmatpush.bf16.msra.mxu0 %v298
    %310 = vmatpush.bf16.msra.mxu0 %v297
    %311 = vmatpush.bf16.msra.mxu0 %v296
    %312 = vmatpush.bf16.msra.mxu0 %v295
    %313 = vmatpush.bf16.msra.mxu0 %v294
    %314 = vmatpush.bf16.msra.mxu0 %v293
    %315 = vmatpush.bf16.msra.mxu0 %v292
    %316 = vmatmul.bf16.gmra.mxu0 %v243
    %v317 = vpop.f32.mrf.mxu0
    %v318 = vadd.f32 0.0, %v317
    %v319 = vpop.f32.mrf.mxu0
    %v320 = vadd.f32 0.0, %v319
    %321 = vdwg.mxu0
    %v322 = vadd.f32 %v88, %v318
    %v323 = vadd.f32 %v89, %v320
    %v324 = vld [vmem:[%s6] sm:$0x1]
    %v326 = vperm.slane %v324, 0
    %v328 = vadd.f32 %v322, %v326
    %v329 = vadd.f32 %v323, %v326
    %330 = vst [vmem:[#allocation10] sm:$0xff] %v328
    %331 = vst [vmem:[#allocation10 + $0x8] sm:$0xff] %v329
    // Predicated region
    $region46: #{tpu_custom_call.1} parent=1 // pred_check
      _
    $region47: #{tpu_custom_call.1} parent=1 // pred_check_branch
      %333 = sbr.rel (0) target = $region49
    $region48: #{tpu_custom_call.1} parent=1 // pred_region
      %335 = vsyncadd [#allocation4], 0
      %s336 = sshll.u32 [#allocation10], 4
      %s337 = int_to_ptr.vmem [resolvable:$true] %s336
      %s338 = sshll.u32 %s7, 4
      %s339 = int_to_ptr.hbm [resolvable:$true] %s338
      %344 = dma.vmem_to_hbm [thread:$0]  %s337, 256, %s339, [#allocation4], 128, 128, 8
    $region49: #{tpu_custom_call.1} parent=1 // pred_fallthru
      _
    // Predicated region
    $region50: #{tpu_custom_call.1} parent=1 // pred_check
      _
    $region51: #{tpu_custom_call.1} parent=1 // pred_check_branch
      %346 = sbr.rel (0) target = $region53
    $region52: #{tpu_custom_call.1} parent=1 // pred_region
      %348 = dma.done [#allocation4], 256
    $region53: #{tpu_custom_call.1} parent=1 // pred_fallthru
      _
    %349 = vsyncpa [#allocation3], 1
    %350 = vsyncpa [#allocation6], 1
    %351 = vsyncpa [#allocation9], 1
    %352 = vsyncpa [#allocation4], 1

</llo_original>
